<compile_context>
chip_gen: v6e
topology: v6e:2x2x1
jax: 0.10.0
libtpu: 0.0.40
codegen_flags: <defaults>
</compile_context>

<pallas_src>
import functools
import math

import jax
import jax.numpy as jnp
from jax.experimental import pallas as pl
from jax.experimental.pallas import tpu as pltpu


_VMEM_BUDGET = 40 * 1024 * 1024   # conservative: v7x physical VMEM is 64 MiB


def _round_up(v, m):
    return (v + m - 1) // m * m


def _choose_tiles(n, row_tile, k_tile):
    """Pick (n_p, tm, tk): multiples of 128 that divide the padded size n_p.

    Pads N up to a multiple of the contraction tile (a few zero rows/cols is
    far cheaper than letting tiles collapse to 128 and paying per-grid-step
    overhead), and makes the 'parallel' row-tile count even when possible so
    v7x's two TensorCores stay balanced.
    """
    assert row_tile % 128 == 0 and k_tile % 128 == 0
    n128 = _round_up(n, 128)
    tk = min(k_tile, n128)
    n_p = _round_up(n, tk)
    tm = min(row_tile, n_p)
    while n_p % tm:
        tm -= 128
    if (n_p // tm) % 2 == 1 and tm % 256 == 0:
        tm //= 2                       # even row-tile count for 2 TCs (v7x)
    return n_p, tm, tk


# ----------------------------------------------------------------------------
# Stage 1: projection  h = x @ W (+ b), bf16 operands, f32 accumulation,
# emitted in bf16.
# ----------------------------------------------------------------------------
def _proj_kernel_bias(x_ref, w_ref, b_ref, h_ref):
    h = jnp.dot(x_ref[...], w_ref[...], preferred_element_type=jnp.float32)
    h_ref[...] = (h + b_ref[...]).astype(h_ref.dtype)


def _proj_kernel_nobias(x_ref, w_ref, h_ref):
    h = jnp.dot(x_ref[...], w_ref[...], preferred_element_type=jnp.float32)
    h_ref[...] = h.astype(h_ref.dtype)


# ----------------------------------------------------------------------------
# Stage 2: propagation  out = relu(norm_GG @ h), K-blocked, f32 accumulation.
# h_resident: h_ref is the full (n_p, out_ft_p) array pinned in VMEM and we
# slice the current contraction chunk with pl.ds; otherwise h_ref is a
# streamed (tk, out_ft_p) tile.
# ----------------------------------------------------------------------------
def _prop_kernel(a_ref, h_ref, o_ref, acc_ref, *, activation, tk, h_resident):
    k = pl.program_id(1)

    if h_resident:
        hk = h_ref[pl.ds(pl.multiple_of(k * tk, tk), tk), :]
    else:
        hk = h_ref[...]

    part = jnp.dot(a_ref[...], hk, preferred_element_type=jnp.float32)

    @pl.when(k == 0)
    def _():
        acc_ref[...] = part            # first step: plain write, no zero-init RMW

    @pl.when(k > 0)
    def _():
        acc_ref[...] += part

    @pl.when(k == pl.num_programs(1) - 1)
    def _():
        out = acc_ref[...]
        if activation:
            out = jnp.maximum(out, 0.0)
        o_ref[...] = out.astype(o_ref.dtype)


# ----------------------------------------------------------------------------
# Wrapper
# ----------------------------------------------------------------------------
def gnn_conv(x, norm_gg, weight, bias=None, activation=True, *,
             row_tile=512, k_tile=1024):
    """Pallas implementation of GNN_conv.forward.

    x:       (N, in_ft)
    norm_gg: (N, N) dense representation of the sparse propagation matrix
    weight:  (in_ft, out_ft)
    bias:    (out_ft,) or None
    """
    n, in_ft = x.shape
    in_ft_w, out_ft = weight.shape
    assert in_ft == in_ft_w
    assert norm_gg.shape == (n, n)
    out_dtype = x.dtype
    use_bias = bias is not None

    # Lane-dense output: pad out_ft to a multiple of 128.
    out_ft_p = _round_up(out_ft, 128)

    # MXU/DMA-friendly tiles; N padded so tiles never collapse to 128.
    n_p, tm, tk = _choose_tiles(n, row_tile, k_tile)

    # ---- Operand prep: cast to bf16 FIRST, pad only if needed -------------
    x_bf = x.astype(jnp.bfloat16)
    if n_p != n:
        x_bf = jnp.pad(x_bf, ((0, n_p - n), (0, 0)))

    w_bf = weight
    if out_ft_p != out_ft:
        w_bf = jnp.pad(w_bf, ((0, 0), (0, out_ft_p - out_ft)))
    w_bf = w_bf.astype(jnp.bfloat16)

    if use_bias:
        b_f32 = bias.astype(jnp.float32)
        if out_ft_p != out_ft:
            b_f32 = jnp.pad(b_f32, (0, out_ft_p - out_ft))
        b_f32 = b_f32.reshape(1, out_ft_p)

    # Padded rows of x acquire h = bias (non-zero); this is harmless because
    # the padded COLUMNS of norm_gg below are explicitly zero.
    a_bf16 = norm_gg.astype(jnp.bfloat16)
    if n_p != n:
        a_bf16 = jnp.pad(a_bf16, ((0, n_p - n), (0, n_p - n)))

    # ---- Stage 1: projection (h in bf16) ----------------------------------
    in_specs = [
        pl.BlockSpec((tm, in_ft), lambda i: (i, 0)),        # x row tile
        pl.BlockSpec((in_ft, out_ft_p), lambda i: (0, 0)),  # W (full)
    ]
    args = [x_bf, w_bf]
    if use_bias:
        in_specs.append(pl.BlockSpec((1, out_ft_p), lambda i: (0, 0)))
        args.append(b_f32)
        proj_kernel = _proj_kernel_bias
    else:
        proj_kernel = _proj_kernel_nobias

    h = pl.pallas_call(
        proj_kernel,
        out_shape=jax.ShapeDtypeStruct((n_p, out_ft_p), jnp.bfloat16),
        grid_spec=pltpu.PrefetchScalarGridSpec(
            num_scalar_prefetch=0,
            grid=(n_p // tm,),
            in_specs=in_specs,
            out_specs=pl.BlockSpec((tm, out_ft_p), lambda i: (i, 0)),
        ),
        compiler_params=pltpu.CompilerParams(
            dimension_semantics=("parallel",)),
    )(*args)

    # ---- Stage 2: propagation + ReLU ---------------------------------------
    out_isize = jnp.dtype(out_dtype).itemsize

    def _stage2_vmem(h_res):
        a_buf = 2 * tm * tk * 2                                # A, double-buffered
        h_buf = 2 * (n_p if h_res else tk) * out_ft_p * 2      # h (resident or tiled)
        o_buf = 2 * tm * out_ft_p * out_isize                  # output
        acc = tm * out_ft_p * 4                                # f32 accumulator
        return a_buf + h_buf + o_buf + acc

    h_resident = _stage2_vmem(True) <= _VMEM_BUDGET
    need = _stage2_vmem(h_resident)
    # Default scoped VMEM limits (16/32 MiB) would reject the big-tile /
    # h-resident config; raise the limit, but stay under v7x's 64 MiB.
    vmem_limit = int(min(max(need + (8 << 20), 32 << 20), 60 << 20))

    if h_resident:
        h_spec = pl.BlockSpec((n_p, out_ft_p), lambda i, k: (0, 0))   # single DMA
    else:
        h_spec = pl.BlockSpec((tk, out_ft_p), lambda i, k: (k, 0))    # streamed

    prop = functools.partial(_prop_kernel, activation=activation,
                             tk=tk, h_resident=h_resident)

    out_p = pl.pallas_call(
        prop,
        out_shape=jax.ShapeDtypeStruct((n_p, out_ft_p), out_dtype),
        grid_spec=pltpu.PrefetchScalarGridSpec(
            num_scalar_prefetch=0,
            grid=(n_p // tm, n_p // tk),
            in_specs=[
                pl.BlockSpec((tm, tk), lambda i, k: (i, k)),   # A tile
                h_spec,                                        # h
            ],
            out_specs=pl.BlockSpec((tm, out_ft_p), lambda i, k: (i, 0)),
            scratch_shapes=[pltpu.VMEM((tm, out_ft_p), jnp.float32)],
        ),
        compiler_params=pltpu.CompilerParams(
            dimension_semantics=("parallel", "arbitrary"),
            vmem_limit_bytes=vmem_limit),
    )(a_bf16, h)

    return out_p[:n, :out_ft]


if __name__ == "__main__":
    # Small shapes consistent with the module: N nodes, in_ft -> out_ft.
    N, IN_FT, OUT_FT = 512, 64, 128

    key = jax.random.PRNGKey(0)
    kx, ka, kw, kb = jax.random.split(key, 4)

    # Deterministic parameter init matching reset_parameters():
    # uniform(-stdv, stdv) with stdv = 1/sqrt(out_ft).
    stdv = 1.0 / math.sqrt(OUT_FT)
    weight = jax.random.uniform(kw, (IN_FT, OUT_FT), jnp.float32, -stdv, stdv)
    bias = jax.random.uniform(kb, (OUT_FT,), jnp.float32, -stdv, stdv)

    x = jax.random.normal(kx, (N, IN_FT), jnp.float32)

    # Sparse normalized propagation matrix, represented densely.
    dense = jax.random.uniform(ka, (N, N), jnp.float32)
    mask = (dense < 0.1).astype(jnp.float32)            # ~10% sparsity pattern
    deg = jnp.maximum(mask.sum(axis=1, keepdims=True), 1.0)
    norm_gg = mask / deg                                # row-normalized

    out = gnn_conv(x, norm_gg, weight, bias, activation=True)
    out = jax.block_until_ready(out)

    # Pure-JAX f32 reference (same semantics as the PyTorch forward).
    ref = jnp.maximum(norm_gg @ (x @ weight + bias), 0.0)
    assert out.shape == (N, OUT_FT)
    # bf16 operands / f32 accumulation in both matmuls.
    assert jnp.allclose(out, ref, atol=2e-2, rtol=2e-2)

    print("KERNEL_OK")
</pallas_src>

<mosaic_0001>
module attributes {stable_mosaic.version = 11 : i64} {
  func.func @_proj_kernel_bias(%arg0: i32, %arg1: memref<256x64xbf16, #tpu.memory_space<vmem>>, %arg2: memref<64x128xbf16, #tpu.memory_space<vmem>>, %arg3: memref<1x128xf32, #tpu.memory_space<vmem>>, %arg4: memref<256x128xbf16, #tpu.memory_space<vmem>>) attributes {dimension_semantics = [#tpu.dimension_semantics<parallel>], iteration_bounds = array<i64: 2>, scalar_prefetch = 0 : i64, scratch_operands = 0 : i64, tpu.core_type = #tpu.core_type<tc>, window_params = [{transform_indices = @transform_0, window_bounds = array<i64: 256, 64>}, {pipeline_mode = #tpu.pipeline_mode<synchronous>, transform_indices = @transform_1, window_bounds = array<i64: 64, 128>}, {pipeline_mode = #tpu.pipeline_mode<synchronous>, transform_indices = @transform_2, window_bounds = array<i64: 1, 128>}, {transform_indices = @transform_3, window_bounds = array<i64: 256, 128>}]} {
    %c0 = arith.constant 0 : index
    %c0_0 = arith.constant 0 : index
    %0 = vector.load %arg1[%c0, %c0_0] : memref<256x64xbf16, #tpu.memory_space<vmem>>, vector<256x64xbf16>
    %c0_1 = arith.constant 0 : index
    %c0_2 = arith.constant 0 : index
    %1 = vector.load %arg2[%c0_1, %c0_2] : memref<64x128xbf16, #tpu.memory_space<vmem>>, vector<64x128xbf16>
    %cst = arith.constant dense<0.000000e+00> : vector<256x128xf32>
    %2 = tpu.matmul %0, %1, %cst {dimension_numbers = #tpu.dot_dimension_numbers<[1], [0], [0], [1], [0, 0, 1, 1], [], []>} : vector<256x64xbf16>, vector<64x128xbf16>, vector<256x128xf32> -> vector<256x128xf32>
    %c0_3 = arith.constant 0 : index
    %c0_4 = arith.constant 0 : index
    %3 = vector.load %arg3[%c0_3, %c0_4] : memref<1x128xf32, #tpu.memory_space<vmem>>, vector<1x128xf32>
    %4 = vector.broadcast %3 : vector<1x128xf32> to vector<256x128xf32>
    %5 = arith.addf %2, %4 : vector<256x128xf32>
    %6 = arith.truncf %5 : vector<256x128xf32> to vector<256x128xbf16>
    %c0_5 = arith.constant 0 : index
    %c0_6 = arith.constant 0 : index
    %7 = vector.load %arg4[%c0_5, %c0_6] : memref<256x128xbf16, #tpu.memory_space<vmem>>, vector<256x128xbf16>
    tpu.vector_store %arg4[%c0_5, %c0_6], %6 {strides = array<i32>} : memref<256x128xbf16, #tpu.memory_space<vmem>>, vector<256x128xbf16>,
    return
  }
  func.func @transform_0(%arg0: i32) -> (i32, i32) {
    %c0_i32 = arith.constant 0 : i32
    %c0_i32_0 = arith.constant 0 : i32
    return %arg0, %c0_i32 : i32, i32
  }
  func.func @transform_1(%arg0: i32) -> (i32, i32) {
    %c0_i32 = arith.constant 0 : i32
    %c0_i32_0 = arith.constant 0 : i32
    %c0_i32_1 = arith.constant 0 : i32
    return %c0_i32, %c0_i32_0 : i32, i32
  }
  func.func @transform_2(%arg0: i32) -> (i32, i32) {
    %c0_i32 = arith.constant 0 : i32
    %c0_i32_0 = arith.constant 0 : i32
    %c0_i32_1 = arith.constant 0 : i32
    return %c0_i32, %c0_i32_0 : i32, i32
  }
  func.func @transform_3(%arg0: i32) -> (i32, i32) {
    %c0_i32 = arith.constant 0 : i32
    %c0_i32_0 = arith.constant 0 : i32
    return %arg0, %c0_i32 : i32, i32
  }
}

</mosaic_0001>

<llo_original>
// kernel: tpu_custom_call.1
$region0: #{tpu_custom_call.1}
  #allocation0 [shape = 'u32[]', space=smem, size = 0x4, offset = 0x4, fixed_abs, tag = 'smem constant byte address 0x4 - core index']
  #allocation1 [shape = 'u32[144,128]{1,0:T(1,128)}', space=vmem, size = 0x12000, scoped, tag = 'internal scratch']
  %s0 = inlined_call_operand.vmem [shape: bf16[512,64], index: 0, kind: input, shape index: {}]
  %s1 = inlined_call_operand.vmem [shape: bf16[64,128], index: 1, kind: input, shape index: {}]
  %s2 = inlined_call_operand.vmem [shape: f32[1,128], index: 2, kind: input, shape index: {}]
  %s3 = inlined_call_operand.hbm [shape: bf16[512,128], index: 3, kind: output, shape index: {}]
  %s4 = sld [smem:[#allocation0]]
  $region45: #{tpu_custom_call.1} parent=0
    _
  %s6 = ssub.s32 1, %s4
  %s7 = scalar_select 0, %s6, %s4
  $region1: #{tpu_custom_call.1} parent=0
    #allocation2 [shape = 'u8[131072]{0}', space=vmem, size = 0x20000, scoped, tag = 'output window, operand 0']
    #allocation3 [shape = 's32[2]{0}', space=sflag, size = 0x8, scoped, tag = 'scoped memory for tpu_custom_call.1']
    %8 = vsyncpa [#allocation3], 0
    %s9 = scalar_lea.sflag [#allocation3], 1
    %10 = vsyncpa %s9, 0
    loop: start=0, step=1, limit=4
    $region2: #{tpu_custom_call.1} parent=1 // loop_pre_header
      _
    $region3: #{tpu_custom_call.1} parent=1 // loop_header
      %s12 = sphi 0, %s16
      %p13 = scmp.ge.s32.totalorder %s12, 4
      %s22 = sphi 0, %s24
      %s25 = sphi 0, %s22
      %s26 = sphi 0, %s25
      %s42 = sphi 0, %s26
      %s46 = sphi 0, %s46
      %s48 = sphi 0, %s46
      %s49 = sphi 0, %s48
      %s63 = sphi 0, %s49
      %s67 = sphi 0, %s67
      %s69 = sphi 0, %s67
      %s70 = sphi 0, %s69
      %s84 = sphi 0, %s70
      %s90 = sphi 0, %s92
      %s93 = sphi 0, %s90
      %s94 = sphi 0, %s93
      %s110 = sphi 0, %s94
    $region4: #{tpu_custom_call.1} parent=1 // loop_header_branch
      %15 = sbr.rel (%p13) target = $region8
    $region5: #{tpu_custom_call.1} parent=1 // loop_body
      %s17 = ssub.s32 %s12, 1
      %s18 = ssub.s32 %s12, 2
      %s19 = sadd.s32 %s12, 1
      %s20 = ssub.s32 %s12, %s19
      %p21 = scmp.eq.s32.totalorder %s20, 0
      %s23 = sadd.s32 %s22, 1
      %s24 = scalar_select %p21, %s22, %s23
      %p27 = pneg %p21
      %p28 = scmp.eq.s32.totalorder %s12, 1
      %p29 = por %p27, %p28
      %p30 = scmp.ne.s32.totalorder %s22, %s25
      %p31 = scmp.eq.s32.totalorder %s12, 0
      %p32 = por %p30, %p31
      %p33 = scmp.ne.s32.totalorder %s22, %s25
      %p34 = scmp.eq.s32.totalorder %s17, 1
      %p35 = por %p33, %p34
      %p36 = scmp.ne.s32.totalorder %s25, %s26
      %p37 = scmp.eq.s32.totalorder %s17, 0
      %p38 = por %p36, %p37
      %p39 = scmp.ne.s32.totalorder %s25, %s26
      %p40 = scmp.eq.s32.totalorder %s18, 1
      %p41 = por %p39, %p40
      %p43 = scmp.ne.s32.totalorder %s26, %s42
      %p44 = scmp.eq.s32.totalorder %s18, 0
      %p45 = por %p43, %p44
      %s47 = sadd.s32 %s46, 1
      %p50 = scmp.eq.s32.totalorder %s12, 1
      %p51 = scmp.ne.s32.totalorder %s46, %s48
      %p52 = scmp.eq.s32.totalorder %s12, 0
      %p53 = por %p51, %p52
      %p54 = scmp.ne.s32.totalorder %s46, %s48
      %p55 = scmp.eq.s32.totalorder %s17, 1
      %p56 = por %p54, %p55
      %p57 = scmp.ne.s32.totalorder %s48, %s49
      %p58 = scmp.eq.s32.totalorder %s17, 0
      %p59 = por %p57, %p58
      %p60 = scmp.ne.s32.totalorder %s48, %s49
      %p61 = scmp.eq.s32.totalorder %s18, 1
      %p62 = por %p60, %p61
      %p64 = scmp.ne.s32.totalorder %s49, %s63
      %p65 = scmp.eq.s32.totalorder %s18, 0
      %p66 = por %p64, %p65
      %s68 = sadd.s32 %s67, 1
      %p71 = scmp.eq.s32.totalorder %s12, 1
      %p72 = scmp.ne.s32.totalorder %s67, %s69
      %p73 = scmp.eq.s32.totalorder %s12, 0
      %p74 = por %p72, %p73
      %p75 = scmp.ne.s32.totalorder %s67, %s69
      %p76 = scmp.eq.s32.totalorder %s17, 1
      %p77 = por %p75, %p76
      %p78 = scmp.ne.s32.totalorder %s69, %s70
      %p79 = scmp.eq.s32.totalorder %s17, 0
      %p80 = por %p78, %p79
      %p81 = scmp.ne.s32.totalorder %s69, %s70
      %p82 = scmp.eq.s32.totalorder %s18, 1
      %p83 = por %p81, %p82
      %p85 = scmp.ne.s32.totalorder %s70, %s84
      %p86 = scmp.eq.s32.totalorder %s18, 0
      %p87 = por %p85, %p86
      %s88 = ssub.s32 %s12, %s19
      %p89 = scmp.eq.s32.totalorder %s88, 0
      %s91 = sadd.s32 %s90, 1
      %s92 = scalar_select %p89, %s90, %s91
      %p95 = pneg %p89
      %p96 = scmp.eq.s32.totalorder %s12, 1
      %p97 = por %p95, %p96
      %p98 = scmp.ne.s32.totalorder %s90, %s93
      %p99 = scmp.eq.s32.totalorder %s12, 0
      %p100 = por %p98, %p99
      %p101 = scmp.ne.s32.totalorder %s90, %s93
      %p102 = scmp.eq.s32.totalorder %s17, 1
      %p103 = por %p101, %p102
      %p104 = scmp.ne.s32.totalorder %s93, %s94
      %p105 = scmp.eq.s32.totalorder %s17, 0
      %p106 = por %p104, %p105
      %p107 = scmp.ne.s32.totalorder %s93, %s94
      %p108 = scmp.eq.s32.totalorder %s18, 1
      %p109 = por %p107, %p108
      %p111 = scmp.ne.s32.totalorder %s94, %s110
      %p112 = scmp.eq.s32.totalorder %s18, 0
      %p113 = por %p111, %p112
      %p114 = scmp.le.s32.totalorder 1, %s12
      %p115 = scmp.lt.s32.totalorder %s12, 3
      %p116 = pnand %p114, %p115
      %p117 = pneg %p116
      // Predicated region
      $region9: #{tpu_custom_call.1} parent=5 // pred_check
        _
      $region10: #{tpu_custom_call.1} parent=5 // pred_check_branch
        %119 = sbr.rel (%p116) target = $region12
      $region11: #{tpu_custom_call.1} parent=5 // pred_region
        %s120 = ssub.s32 %s12, 1
        // Predicated region
        $region13: #{tpu_custom_call.1} parent=11 // pred_check
          %p121 = pneg %p59
        $region14: #{tpu_custom_call.1} parent=11 // pred_check_branch
          %123 = sbr.rel (%p121) target = $region16
        $region15: #{tpu_custom_call.1} parent=11 // pred_region
          _
        $region16: #{tpu_custom_call.1} parent=11 // pred_fallthru
          _
        // Predicated region
        $region17: #{tpu_custom_call.1} parent=11 // pred_check
          %p124 = pneg %p80
        $region18: #{tpu_custom_call.1} parent=11 // pred_check_branch
          %126 = sbr.rel (%p124) target = $region20
        $region19: #{tpu_custom_call.1} parent=11 // pred_region
          _
        $region20: #{tpu_custom_call.1} parent=11 // pred_fallthru
          _
      $region12: #{tpu_custom_call.1} parent=5 // pred_fallthru
        _
      %p127 = scmp.lt.s32.totalorder %s12, 2
      // Predicated region
      $region21: #{tpu_custom_call.1} parent=5 // pred_check
        %p128 = pneg %p127
      $region22: #{tpu_custom_call.1} parent=5 // pred_check_branch
        %130 = sbr.rel (%p128) target = $region24
      $region23: #{tpu_custom_call.1} parent=5 // pred_region
        // Predicated region
        $region25: #{tpu_custom_call.1} parent=23 // pred_check
          %p131 = pneg %p32
        $region26: #{tpu_custom_call.1} parent=23 // pred_check_branch
          %133 = sbr.rel (%p131) target = $region28
        $region27: #{tpu_custom_call.1} parent=23 // pred_region
          %s134 = smul.u32 32, %s12
          %p135 = scmp.lt.s32.totalorder %s134, 63
          %s136 = scalar_select %p135, %s134, 63
          %s137 = smul.addr %s136, 4
          %s138 = scalar_lea.vmem %s0, %s137
          %s139 = smul.u32 32, %s12
        $region28: #{tpu_custom_call.1} parent=23 // pred_fallthru
          _
      $region24: #{tpu_custom_call.1} parent=5 // pred_fallthru
        _
      %p140 = scmp.le.s32.totalorder 1, %s12
      %p141 = scmp.lt.s32.totalorder %s12, 3
      %p142 = pnand %p140, %p141
      %p143 = pneg %p142
      // Predicated region
      $region29: #{tpu_custom_call.1} parent=5 // pred_check
        _
      $region30: #{tpu_custom_call.1} parent=5 // pred_check_branch
        %145 = sbr.rel (%p142) target = $region32
      $region31: #{tpu_custom_call.1} parent=5 // pred_region
        %s146 = ssub.s32 %s12, 1
        %s147 = smul.u32 32, %s17
        %p148 = scmp.lt.s32.totalorder %s147, 63
        %s149 = scalar_select %p148, %s147, 63
        %s150 = smul.addr %s149, 4
        %s151 = scalar_lea.vmem %s0, %s150
        %p152 = pneg %p38
        %p153 = pneg %p35
        %p154 = pneg %p59
        %p155 = pneg %p56
        %p156 = pneg %p80
        %p157 = pneg %p77
        %p158 = pneg %p106
        %p159 = pneg %p103
        %s160 = sand.u32 %s93, 1
        %s161 = scalar_lea.sflag [#allocation3], %s160
        %s162 = sand.u32 %s93, 1
        %s163 = smul.addr %s162, 128
        %s164 = scalar_lea.vmem [#allocation2], %s163
        %s165 = smul.u32 32, %s17
        %p166 = scmp.lt.s32.totalorder %s165, 63
        %s167 = scalar_select %p166, %s165, 63
        %s168 = smul.addr %s167, 4
        %s169 = scalar_lea.vmem %s0, %s168
        %s170 = smul.u32 32, %s17
        %s171 = smul.u32 32, %s17
        %v173 = vld [vmem:[%s169] sm:$0xf]
        %v174 = vld [vmem:[%s169 + $0x4] sm:$0xf]
        %v175 = vld [vmem:[%s169 + $0x8] sm:$0xf]
        %v176 = vld [vmem:[%s169 + $0xc] sm:$0xf]
        %v177 = vld [vmem:[%s169 + $0x10] sm:$0xf]
        %v178 = vld [vmem:[%s169 + $0x14] sm:$0xf]
        %v179 = vld [vmem:[%s169 + $0x18] sm:$0xf]
        %v180 = vld [vmem:[%s169 + $0x1c] sm:$0xf]
        %v181 = vld [vmem:[%s169 + $0x20] sm:$0xf]
        %v182 = vld [vmem:[%s169 + $0x24] sm:$0xf]
        %v183 = vld [vmem:[%s169 + $0x28] sm:$0xf]
        %v184 = vld [vmem:[%s169 + $0x2c] sm:$0xf]
        %v185 = vld [vmem:[%s169 + $0x30] sm:$0xf]
        %v186 = vld [vmem:[%s169 + $0x34] sm:$0xf]
        %v187 = vld [vmem:[%s169 + $0x38] sm:$0xf]
        %v188 = vld [vmem:[%s169 + $0x3c] sm:$0xf]
        %v189 = vld [vmem:[%s169 + $0x40] sm:$0xf]
        %v190 = vld [vmem:[%s169 + $0x44] sm:$0xf]
        %v191 = vld [vmem:[%s169 + $0x48] sm:$0xf]
        %v192 = vld [vmem:[%s169 + $0x4c] sm:$0xf]
        %v193 = vld [vmem:[%s169 + $0x50] sm:$0xf]
        %v194 = vld [vmem:[%s169 + $0x54] sm:$0xf]
        %v195 = vld [vmem:[%s169 + $0x58] sm:$0xf]
        %v196 = vld [vmem:[%s169 + $0x5c] sm:$0xf]
        %v197 = vld [vmem:[%s169 + $0x60] sm:$0xf]
        %v198 = vld [vmem:[%s169 + $0x64] sm:$0xf]
        %v199 = vld [vmem:[%s169 + $0x68] sm:$0xf]
        %v200 = vld [vmem:[%s169 + $0x6c] sm:$0xf]
        %v201 = vld [vmem:[%s169 + $0x70] sm:$0xf]
        %v202 = vld [vmem:[%s169 + $0x74] sm:$0xf]
        %v203 = vld [vmem:[%s169 + $0x78] sm:$0xf]
        %v204 = vld [vmem:[%s169 + $0x7c] sm:$0xf]
        %v205 = vld [vmem:[%s1] sm:$0xf]
        %v206 = vld [vmem:[%s1 + $0x4] sm:$0xf]
        %v207 = vld [vmem:[%s1 + $0x8] sm:$0xf]
        %v208 = vld [vmem:[%s1 + $0xc] sm:$0xf]
        %v209 = vld [vmem:[%s1 + $0x10] sm:$0xf]
        %v210 = vld [vmem:[%s1 + $0x14] sm:$0xf]
        %v211 = vld [vmem:[%s1 + $0x18] sm:$0xf]
        %v212 = vld [vmem:[%s1 + $0x1c] sm:$0xf]
        %v213 = vld [vmem:[%s2] sm:$0x1]
        %v215 = vlaneseq
        %v216 = vshrl.u32 %v215, 7
        %v217 = vsub.s32 0, %v216
        %v218 = vrot.slane %v213, %v217
        %v252 = vunpack.c.l.b16 %v173
        %v253 = vunpack.c.l.b16 %v174
        %v254 = vunpack.c.l.b16 %v175
        %v255 = vunpack.c.l.b16 %v176
        %v256 = vunpack.c.l.b16 %v177
        %v257 = vunpack.c.l.b16 %v178
        %v258 = vunpack.c.l.b16 %v179
        %v259 = vunpack.c.l.b16 %v180
        %v260 = vunpack.c.l.b16 %v181
        %v261 = vunpack.c.l.b16 %v182
        %v262 = vunpack.c.l.b16 %v183
        %v263 = vunpack.c.l.b16 %v184
        %v264 = vunpack.c.l.b16 %v185
        %v265 = vunpack.c.l.b16 %v186
        %v266 = vunpack.c.l.b16 %v187
        %v267 = vunpack.c.l.b16 %v188
        %v268 = vunpack.c.l.b16 %v189
        %v269 = vunpack.c.l.b16 %v190
        %v270 = vunpack.c.l.b16 %v191
        %v271 = vunpack.c.l.b16 %v192
        %v272 = vunpack.c.l.b16 %v193
        %v273 = vunpack.c.l.b16 %v194
        %v274 = vunpack.c.l.b16 %v195
        %v275 = vunpack.c.l.b16 %v196
        %v276 = vunpack.c.l.b16 %v197
        %v277 = vunpack.c.l.b16 %v198
        %v278 = vunpack.c.l.b16 %v199
        %v279 = vunpack.c.l.b16 %v200
        %v280 = vunpack.c.l.b16 %v201
        %v281 = vunpack.c.l.b16 %v202
        %v282 = vunpack.c.l.b16 %v203
        %v283 = vunpack.c.l.b16 %v204
        %v284 = vpack.c.b16 %v253, %v252
        %v285 = vpack.c.b16 %v255, %v254
        %v286 = vpack.c.b16 %v257, %v256
        %v287 = vpack.c.b16 %v259, %v258
        %v288 = vpack.c.b16 %v261, %v260
        %v289 = vpack.c.b16 %v263, %v262
        %v290 = vpack.c.b16 %v265, %v264
        %v291 = vpack.c.b16 %v267, %v266
        %v292 = vpack.c.b16 %v269, %v268
        %v293 = vpack.c.b16 %v271, %v270
        %v294 = vpack.c.b16 %v273, %v272
        %v295 = vpack.c.b16 %v275, %v274
        %v296 = vpack.c.b16 %v277, %v276
        %v297 = vpack.c.b16 %v279, %v278
        %v298 = vpack.c.b16 %v281, %v280
        %v299 = vpack.c.b16 %v283, %v282
        %v308 = vunpack.c.l.b16 %v205
        %v309 = vunpack.c.l.b16 %v206
        %v310 = vunpack.c.l.b16 %v207
        %v311 = vunpack.c.l.b16 %v208
        %v312 = vunpack.c.l.b16 %v209
        %v313 = vunpack.c.l.b16 %v210
        %v314 = vunpack.c.l.b16 %v211
        %v315 = vunpack.c.l.b16 %v212
        %v316 = vpack.c.b16 %v309, %v308
        %v317 = vpack.c.b16 %v311, %v310
        %v318 = vpack.c.b16 %v313, %v312
        %v319 = vpack.c.b16 %v315, %v314
        %vm324 = vcmask 523264
        %v326 = vsel %vm324, %v284, 0
        %v329 = vsel %vm324, %v285, 0
        %v332 = vsel %vm324, %v286, 0
        %v335 = vsel %vm324, %v287, 0
        %v338 = vsel %vm324, %v288, 0
        %v341 = vsel %vm324, %v289, 0
        %v344 = vsel %vm324, %v290, 0
        %v347 = vsel %vm324, %v291, 0
        %v350 = vsel %vm324, %v292, 0
        %v353 = vsel %vm324, %v293, 0
        %v356 = vsel %vm324, %v294, 0
        %v359 = vsel %vm324, %v295, 0
        %v362 = vsel %vm324, %v296, 0
        %v365 = vsel %vm324, %v297, 0
        %v368 = vsel %vm324, %v298, 0
        %v371 = vsel %vm324, %v299, 0
        %373 = vmatprep.subr.bf16.mxu0 0
        %374 = vmatpush1.bf16.msra.mxu0 0
        %375 = vmatprep.subr.bf16.mxu0 0
        %376 = vmatpush1.bf16.msra.mxu0 0
        %377 = vmatprep.subr.bf16.mxu0 0
        %378 = vmatpush1.bf16.msra.mxu0 0
        %379 = vmatprep.subr.bf16.mxu0 0
        %380 = vmatpush1.bf16.msra.mxu0 0
        %381 = vmatprep.subr.bf16.mxu0 0
        %382 = vmatpush1.bf16.msra.mxu0 %v319
        %383 = vmatprep.subr.bf16.mxu0 0
        %384 = vmatpush1.bf16.msra.mxu0 %v318
        %385 = vmatprep.subr.bf16.mxu0 0
        %386 = vmatpush1.bf16.msra.mxu0 %v317
        %387 = vmatprep.subr.bf16.mxu0 0
        %388 = vmatpush1.bf16.msra.mxu0 %v316
        %389 = vmatprep.subr.bf16.mxu0 0
        %390 = vmatpush2.bf16.msra.mxu0 0
        %391 = vmatprep.subr.bf16.mxu0 0
        %392 = vmatpush2.bf16.msra.mxu0 0
        %393 = vmatprep.subr.bf16.mxu0 0
        %394 = vmatpush2.bf16.msra.mxu0 0
        %395 = vmatprep.subr.bf16.mxu0 0
        %396 = vmatpush2.bf16.msra.mxu0 0
        %397 = vmatprep.subr.bf16.mxu0 0
        %398 = vmatpush2.bf16.msra.mxu0 0
        %399 = vmatprep.subr.bf16.mxu0 0
        %400 = vmatpush2.bf16.msra.mxu0 0
        %401 = vmatprep.subr.bf16.mxu0 0
        %402 = vmatpush2.bf16.msra.mxu0 0
        %403 = vmatprep.subr.bf16.mxu0 0
        %404 = vmatpush2.bf16.msra.mxu0 0
        %405 = vmatprep.mubr.bf16.mxu0 0
        %406 = vmatmul.mubr.bf16.gmra.mxu0 %v326
        %v407 = vpop.f32.mrf.mxu0
        %v408 = vadd.f32 %v218, %v407
        %v409 = vpop.f32.mrf.mxu0
        %v410 = vpop.f32.mrf.mxu0
        %v411 = vadd.f32 %v218, %v410
        %v412 = vpop.f32.mrf.mxu0
        %413 = vmatprep.mubr.bf16.mxu0 0
        %414 = vmatmul.mubr.bf16.gmra.mxu0 %v329
        %v415 = vpop.f32.mrf.mxu0
        %v416 = vadd.f32 %v218, %v415
        %v417 = vpop.f32.mrf.mxu0
        %v418 = vpop.f32.mrf.mxu0
        %v419 = vadd.f32 %v218, %v418
        %v420 = vpop.f32.mrf.mxu0
        %421 = vmatprep.mubr.bf16.mxu0 0
        %422 = vmatmul.mubr.bf16.gmra.mxu0 %v332
        %v423 = vpop.f32.mrf.mxu0
        %v424 = vadd.f32 %v218, %v423
        %v425 = vpop.f32.mrf.mxu0
        %v426 = vpop.f32.mrf.mxu0
        %v427 = vadd.f32 %v218, %v426
        %v428 = vpop.f32.mrf.mxu0
        %429 = vmatprep.mubr.bf16.mxu0 0
        %430 = vmatmul.mubr.bf16.gmra.mxu0 %v335
        %v431 = vpop.f32.mrf.mxu0
        %v432 = vadd.f32 %v218, %v431
        %v433 = vpop.f32.mrf.mxu0
        %v434 = vpop.f32.mrf.mxu0
        %v435 = vadd.f32 %v218, %v434
        %v436 = vpop.f32.mrf.mxu0
        %437 = vmatprep.mubr.bf16.mxu0 0
        %438 = vmatmul.mubr.bf16.gmra.mxu0 %v338
        %v439 = vpop.f32.mrf.mxu0
        %v440 = vadd.f32 %v218, %v439
        %v441 = vpop.f32.mrf.mxu0
        %v442 = vpop.f32.mrf.mxu0
        %v443 = vadd.f32 %v218, %v442
        %v444 = vpop.f32.mrf.mxu0
        %445 = vmatprep.mubr.bf16.mxu0 0
        %446 = vmatmul.mubr.bf16.gmra.mxu0 %v341
        %v447 = vpop.f32.mrf.mxu0
        %v448 = vadd.f32 %v218, %v447
        %v449 = vpop.f32.mrf.mxu0
        %v450 = vpop.f32.mrf.mxu0
        %v451 = vadd.f32 %v218, %v450
        %v452 = vpop.f32.mrf.mxu0
        %453 = vmatprep.mubr.bf16.mxu0 0
        %454 = vmatmul.mubr.bf16.gmra.mxu0 %v344
        %v455 = vpop.f32.mrf.mxu0
        %v456 = vadd.f32 %v218, %v455
        %v457 = vpop.f32.mrf.mxu0
        %v458 = vpop.f32.mrf.mxu0
        %v459 = vadd.f32 %v218, %v458
        %v460 = vpop.f32.mrf.mxu0
        %461 = vmatprep.mubr.bf16.mxu0 0
        %462 = vmatmul.mubr.bf16.gmra.mxu0 %v347
        %v463 = vpop.f32.mrf.mxu0
        %v464 = vadd.f32 %v218, %v463
        %v465 = vpop.f32.mrf.mxu0
        %v466 = vpop.f32.mrf.mxu0
        %v467 = vadd.f32 %v218, %v466
        %v468 = vpop.f32.mrf.mxu0
        %469 = vmatprep.mubr.bf16.mxu0 0
        %470 = vmatmul.mubr.bf16.gmra.mxu0 %v350
        %v471 = vpop.f32.mrf.mxu0
        %v472 = vadd.f32 %v218, %v471
        %v473 = vpop.f32.mrf.mxu0
        %v474 = vpop.f32.mrf.mxu0
        %v475 = vadd.f32 %v218, %v474
        %v476 = vpop.f32.mrf.mxu0
        %477 = vmatprep.mubr.bf16.mxu0 0
        %478 = vmatmul.mubr.bf16.gmra.mxu0 %v353
        %v479 = vpop.f32.mrf.mxu0
        %v480 = vadd.f32 %v218, %v479
        %v481 = vpop.f32.mrf.mxu0
        %v482 = vpop.f32.mrf.mxu0
        %v483 = vadd.f32 %v218, %v482
        %v484 = vpop.f32.mrf.mxu0
        %485 = vmatprep.mubr.bf16.mxu0 0
        %486 = vmatmul.mubr.bf16.gmra.mxu0 %v356
        %v487 = vpop.f32.mrf.mxu0
        %v488 = vadd.f32 %v218, %v487
        %v489 = vpop.f32.mrf.mxu0
        %v490 = vpop.f32.mrf.mxu0
        %v491 = vadd.f32 %v218, %v490
        %v492 = vpop.f32.mrf.mxu0
        %493 = vmatprep.mubr.bf16.mxu0 0
        %494 = vmatmul.mubr.bf16.gmra.mxu0 %v359
        %v495 = vpop.f32.mrf.mxu0
        %v496 = vadd.f32 %v218, %v495
        %v497 = vpop.f32.mrf.mxu0
        %v498 = vpop.f32.mrf.mxu0
        %v499 = vadd.f32 %v218, %v498
        %v500 = vpop.f32.mrf.mxu0
        %501 = vmatprep.mubr.bf16.mxu0 0
        %502 = vmatmul.mubr.bf16.gmra.mxu0 %v362
        %v503 = vpop.f32.mrf.mxu0
        %v504 = vadd.f32 %v218, %v503
        %v505 = vpop.f32.mrf.mxu0
        %v506 = vpop.f32.mrf.mxu0
        %v507 = vadd.f32 %v218, %v506
        %v508 = vpop.f32.mrf.mxu0
        %509 = vmatprep.mubr.bf16.mxu0 0
        %510 = vmatmul.mubr.bf16.gmra.mxu0 %v365
        %v511 = vpop.f32.mrf.mxu0
        %v512 = vadd.f32 %v218, %v511
        %v513 = vpop.f32.mrf.mxu0
        %v514 = vpop.f32.mrf.mxu0
        %v515 = vadd.f32 %v218, %v514
        %v516 = vpop.f32.mrf.mxu0
        %517 = vmatprep.mubr.bf16.mxu0 0
        %518 = vmatmul.mubr.bf16.gmra.mxu0 %v368
        %v519 = vpop.f32.mrf.mxu0
        %v520 = vadd.f32 %v218, %v519
        %v521 = vpop.f32.mrf.mxu0
        %v522 = vpop.f32.mrf.mxu0
        %v523 = vadd.f32 %v218, %v522
        %v524 = vpop.f32.mrf.mxu0
        %525 = vmatprep.mubr.bf16.mxu0 0
        %526 = vmatmul.mubr.bf16.gmra.mxu0 %v371
        %v527 = vpop.f32.mrf.mxu0
        %v528 = vadd.f32 %v218, %v527
        %v529 = vpop.f32.mrf.mxu0
        %v530 = vpop.f32.mrf.mxu0
        %v531 = vadd.f32 %v218, %v530
        %v532 = vpop.f32.mrf.mxu0
        %533 = vdwg.mxu0
        %v534 = vpack.c.bf16 %v411, %v408
        %v535 = vpack.c.bf16 %v419, %v416
        %v536 = vpack.c.bf16 %v427, %v424
        %v537 = vpack.c.bf16 %v435, %v432
        %v538 = vpack.c.bf16 %v443, %v440
        %v539 = vpack.c.bf16 %v451, %v448
        %v540 = vpack.c.bf16 %v459, %v456
        %v541 = vpack.c.bf16 %v467, %v464
        %v542 = vpack.c.bf16 %v475, %v472
        %v543 = vpack.c.bf16 %v483, %v480
        %v544 = vpack.c.bf16 %v491, %v488
        %v545 = vpack.c.bf16 %v499, %v496
        %v546 = vpack.c.bf16 %v507, %v504
        %v547 = vpack.c.bf16 %v515, %v512
        %v548 = vpack.c.bf16 %v523, %v520
        %v549 = vpack.c.bf16 %v531, %v528
        %v566 = vunpack.c.l.b16 %v534
        %v567 = vunpack.c.h.b16 %v534
        %v568 = vunpack.c.l.b16 %v535
        %v569 = vunpack.c.h.b16 %v535
        %v570 = vunpack.c.l.b16 %v536
        %v571 = vunpack.c.h.b16 %v536
        %v572 = vunpack.c.l.b16 %v537
        %v573 = vunpack.c.h.b16 %v537
        %v574 = vunpack.c.l.b16 %v538
        %v575 = vunpack.c.h.b16 %v538
        %v576 = vunpack.c.l.b16 %v539
        %v577 = vunpack.c.h.b16 %v539
        %v578 = vunpack.c.l.b16 %v540
        %v579 = vunpack.c.h.b16 %v540
        %v580 = vunpack.c.l.b16 %v541
        %v581 = vunpack.c.h.b16 %v541
        %v582 = vunpack.c.l.b16 %v542
        %v583 = vunpack.c.h.b16 %v542
        %v584 = vunpack.c.l.b16 %v543
        %v585 = vunpack.c.h.b16 %v543
        %v586 = vunpack.c.l.b16 %v544
        %v587 = vunpack.c.h.b16 %v544
        %v588 = vunpack.c.l.b16 %v545
        %v589 = vunpack.c.h.b16 %v545
        %v590 = vunpack.c.l.b16 %v546
        %v591 = vunpack.c.h.b16 %v546
        %v592 = vunpack.c.l.b16 %v547
        %v593 = vunpack.c.h.b16 %v547
        %v594 = vunpack.c.l.b16 %v548
        %v595 = vunpack.c.h.b16 %v548
        %v596 = vunpack.c.l.b16 %v549
        %v597 = vunpack.c.h.b16 %v549
        %v598 = vpack.c.b16 %v566, %v566
        %v599 = vpack.c.b16 %v567, %v567
        %v600 = vpack.c.b16 %v568, %v568
        %v601 = vpack.c.b16 %v569, %v569
        %v602 = vpack.c.b16 %v570, %v570
        %v603 = vpack.c.b16 %v571, %v571
        %v604 = vpack.c.b16 %v572, %v572
        %v605 = vpack.c.b16 %v573, %v573
        %v606 = vpack.c.b16 %v574, %v574
        %v607 = vpack.c.b16 %v575, %v575
        %v608 = vpack.c.b16 %v576, %v576
        %v609 = vpack.c.b16 %v577, %v577
        %v610 = vpack.c.b16 %v578, %v578
        %v611 = vpack.c.b16 %v579, %v579
        %v612 = vpack.c.b16 %v580, %v580
        %v613 = vpack.c.b16 %v581, %v581
        %v614 = vpack.c.b16 %v582, %v582
        %v615 = vpack.c.b16 %v583, %v583
        %v616 = vpack.c.b16 %v584, %v584
        %v617 = vpack.c.b16 %v585, %v585
        %v618 = vpack.c.b16 %v586, %v586
        %v619 = vpack.c.b16 %v587, %v587
        %v620 = vpack.c.b16 %v588, %v588
        %v621 = vpack.c.b16 %v589, %v589
        %v622 = vpack.c.b16 %v590, %v590
        %v623 = vpack.c.b16 %v591, %v591
        %v624 = vpack.c.b16 %v592, %v592
        %v625 = vpack.c.b16 %v593, %v593
        %v626 = vpack.c.b16 %v594, %v594
        %v627 = vpack.c.b16 %v595, %v595
        %v628 = vpack.c.b16 %v596, %v596
        %v629 = vpack.c.b16 %v597, %v597
        %662 = vst [vmem:[%s164] sm:$0xf] %v598
        %663 = vst [vmem:[%s164 + $0x4] sm:$0xf] %v599
        %664 = vst [vmem:[%s164 + $0x8] sm:$0xf] %v600
        %665 = vst [vmem:[%s164 + $0xc] sm:$0xf] %v601
        %666 = vst [vmem:[%s164 + $0x10] sm:$0xf] %v602
        %667 = vst [vmem:[%s164 + $0x14] sm:$0xf] %v603
        %668 = vst [vmem:[%s164 + $0x18] sm:$0xf] %v604
        %669 = vst [vmem:[%s164 + $0x1c] sm:$0xf] %v605
        %670 = vst [vmem:[%s164 + $0x20] sm:$0xf] %v606
        %671 = vst [vmem:[%s164 + $0x24] sm:$0xf] %v607
        %672 = vst [vmem:[%s164 + $0x28] sm:$0xf] %v608
        %673 = vst [vmem:[%s164 + $0x2c] sm:$0xf] %v609
        %674 = vst [vmem:[%s164 + $0x30] sm:$0xf] %v610
        %675 = vst [vmem:[%s164 + $0x34] sm:$0xf] %v611
        %676 = vst [vmem:[%s164 + $0x38] sm:$0xf] %v612
        %677 = vst [vmem:[%s164 + $0x3c] sm:$0xf] %v613
        %678 = vst [vmem:[%s164 + $0x40] sm:$0xf] %v614
        %679 = vst [vmem:[%s164 + $0x44] sm:$0xf] %v615
        %680 = vst [vmem:[%s164 + $0x48] sm:$0xf] %v616
        %681 = vst [vmem:[%s164 + $0x4c] sm:$0xf] %v617
        %682 = vst [vmem:[%s164 + $0x50] sm:$0xf] %v618
        %683 = vst [vmem:[%s164 + $0x54] sm:$0xf] %v619
        %684 = vst [vmem:[%s164 + $0x58] sm:$0xf] %v620
        %685 = vst [vmem:[%s164 + $0x5c] sm:$0xf] %v621
        %686 = vst [vmem:[%s164 + $0x60] sm:$0xf] %v622
        %687 = vst [vmem:[%s164 + $0x64] sm:$0xf] %v623
        %688 = vst [vmem:[%s164 + $0x68] sm:$0xf] %v624
        %689 = vst [vmem:[%s164 + $0x6c] sm:$0xf] %v625
        %690 = vst [vmem:[%s164 + $0x70] sm:$0xf] %v626
        %691 = vst [vmem:[%s164 + $0x74] sm:$0xf] %v627
        %692 = vst [vmem:[%s164 + $0x78] sm:$0xf] %v628
        %693 = vst [vmem:[%s164 + $0x7c] sm:$0xf] %v629
        %s694 = sand.u32 %s93, 1
        %s695 = scalar_lea.sflag [#allocation3], %s694
        %s696 = sand.u32 %s93, 1
        %s697 = smul.addr %s696, 128
        %s698 = scalar_lea.vmem [#allocation2], %s697
        // Predicated region
        $region33: #{tpu_custom_call.1} parent=31 // pred_check
          %p699 = pneg %p103
        $region34: #{tpu_custom_call.1} parent=31 // pred_check_branch
          %701 = sbr.rel (%p699) target = $region36
        $region35: #{tpu_custom_call.1} parent=31 // pred_region
          %s702 = smul.u32 32, %s17
          %s704 = ssub.s32 2048, 2048
          %705 = vsyncadd %s695, %s704
          %s706 = smul.addr %s702, 64
          %s707 = scalar_lea.hbm %s3, %s706
          %s708 = sshll.u32 %s698, 4
          %s709 = int_to_ptr.vmem [resolvable:$true] %s708
          %714 = dma.vmem_to_hbm [thread:$0]  %s709, 2048, %s707, %s695, 64, 64, 4
        $region36: #{tpu_custom_call.1} parent=31 // pred_fallthru
          _
      $region32: #{tpu_custom_call.1} parent=5 // pred_fallthru
        _
      %p715 = scmp.le.s32.totalorder 2, %s12
      // Predicated region
      $region37: #{tpu_custom_call.1} parent=5 // pred_check
        %p716 = pneg %p715
      $region38: #{tpu_custom_call.1} parent=5 // pred_check_branch
        %718 = sbr.rel (%p716) target = $region40
      $region39: #{tpu_custom_call.1} parent=5 // pred_region
        %s719 = ssub.s32 %s12, 2
        // Predicated region
        $region41: #{tpu_custom_call.1} parent=39 // pred_check
          %p720 = pneg %p109
        $region42: #{tpu_custom_call.1} parent=39 // pred_check_branch
          %722 = sbr.rel (%p720) target = $region44
        $region43: #{tpu_custom_call.1} parent=39 // pred_region
          %s723 = sand.u32 %s94, 1
          %s724 = scalar_lea.sflag [#allocation3], %s723
          %s725 = sand.u32 %s94, 1
          %s726 = smul.addr %s725, 128
          %s727 = scalar_lea.vmem [#allocation2], %s726
          %728 = dma.done %s724, 2048
        $region44: #{tpu_custom_call.1} parent=39 // pred_fallthru
          _
      $region40: #{tpu_custom_call.1} parent=5 // pred_fallthru
        _
    $region6: #{tpu_custom_call.1} parent=1 // loop_footer
      %s16 = sadd.s32 1, %s12
    $region7: #{tpu_custom_call.1} parent=1 // loop_footer_branch
      %11 = sbr.rel target = $region3
    $region8: #{tpu_custom_call.1} parent=1 // loop_exit
      _
    %729 = vsyncpa [#allocation3], 1
    %s730 = scalar_lea.sflag [#allocation3], 1
    %731 = vsyncpa %s730, 1

</llo_original>
